<compile_context>
chip_gen: v7x
topology: tpu7x:2x2x1
jax: 0.10.0
libtpu: 0.0.40
codegen_flags: <defaults>
</compile_context>

<pallas_src>
import jax
import jax.numpy as jnp
from jax.experimental import pallas as pl
from jax.experimental.pallas import tpu as pltpu


def _round_up(n, m):
    return ((n + m - 1) // m) * m


def mlp_kernel(xT_ref, w1_ref, b1_ref, w2_ref, b2_ref, w3t_ref, b3_ref, o_ref):
    xT = xT_ref[...]                       # (2, TB) -- batch in lanes
    x0 = xT[0:1, :]                        # (1, TB)
    x1 = xT[1:2, :]                        # (1, TB)

    # Layer 1: Linear(2, 16) as two full-lane broadcast FMAs (K=2 -> no MXU).
    w1 = w1_ref[...]                       # (16, 2)
    h = w1[:, 0:1] * x0 + w1[:, 1:2] * x1 + b1_ref[...]      # (16, TB)
    h = jnp.maximum(h, 0.0)

    # Layer 2: Linear(16, 16) on the MXU -- lane-dense (16, TB) result.
    h = jnp.dot(w2_ref[...], h, preferred_element_type=jnp.float32) + b2_ref[...]
    h = jnp.maximum(h, 0.0)

    # Layer 3: Linear(16, 1) as multiply + sublane reduction (N=1 -> no MXU).
    o_ref[...] = (jnp.sum(w3t_ref[...] * h, axis=0, keepdims=True)
                  + b3_ref[...]).astype(o_ref.dtype)


def mlp_forward(x, params, *, tile_b=1024, min_kernel_batch=256):
    """x: [B, 2] float32. params follow PyTorch nn.Linear: w (out,in), b (out,)."""
    B = x.shape[0]
    if B < min_kernel_batch:
        # Tiny batches: pallas_call fixed overhead dwarfs the work -- let XLA fuse.
        return mlp_reference(x, params)

    tile_b = _round_up(tile_b, 128)
    tile = min(tile_b, _round_up(B, 128))           # lane-dense tile, multiple of 128
    B_pad = _round_up(B, tile)
    grid = B_pad // tile

    xT = jnp.pad(x, ((0, B_pad - B), (0, 0))).T     # (2, B_pad), batch -> lanes
    w1 = params["w1"]                               # (16, 2)
    b1 = params["b1"].reshape(-1, 1)                # (16, 1)
    w2 = params["w2"]                               # (16, 16)
    b2 = params["b2"].reshape(-1, 1)                # (16, 1)
    w3t = params["w3"].T                            # (16, 1)
    b3 = params["b3"].reshape(1, 1)                 # (1, 1)

    def resident(shape):                            # VMEM-resident across the grid
        return pl.BlockSpec(shape, lambda i: (0, 0))

    yT = pl.pallas_call(
        mlp_kernel,
        out_shape=jax.ShapeDtypeStruct((1, B_pad), jnp.float32),
        grid=(grid,),
        in_specs=[
            pl.BlockSpec((2, tile), lambda i: (0, i)),    # xT: streamed batch tiles
            resident(w1.shape), resident(b1.shape),
            resident(w2.shape), resident(b2.shape),
            resident(w3t.shape), resident(b3.shape),
        ],
        out_specs=pl.BlockSpec((1, tile), lambda i: (0, i)),
        compiler_params=pltpu.CompilerParams(
            dimension_semantics=("parallel",)),           # megacore sharding on v7x
    )(xT, w1, b1, w2, b2, w3t, b3)

    return yT.T[:B]                                        # (B, 1)


def init_params(key, layer_sizes=(2, 16, 16, 1)):
    """Mimics torch.nn.Linear default init: U(-1/sqrt(fan_in), +1/sqrt(fan_in))."""
    params = {}
    keys = jax.random.split(key, 2 * (len(layer_sizes) - 1))
    for i in range(len(layer_sizes) - 1):
        fan_in, fan_out = layer_sizes[i], layer_sizes[i + 1]
        bound = 1.0 / (fan_in ** 0.5)
        params[f"w{i + 1}"] = jax.random.uniform(
            keys[2 * i], (fan_out, fan_in), minval=-bound, maxval=bound,
            dtype=jnp.float32)
        params[f"b{i + 1}"] = jax.random.uniform(
            keys[2 * i + 1], (fan_out,), minval=-bound, maxval=bound,
            dtype=jnp.float32)
    return params


def mlp_reference(x, params):
    hp = jax.lax.Precision.HIGHEST
    h = jnp.maximum(jnp.dot(x, params["w1"].T, precision=hp) + params["b1"], 0.0)
    h = jnp.maximum(jnp.dot(h, params["w2"].T, precision=hp) + params["b2"], 0.0)
    return jnp.dot(h, params["w3"].T, precision=hp) + params["b3"]


if __name__ == "__main__":
    key = jax.random.PRNGKey(0)
    k_param, k_small, k_big = jax.random.split(key, 3)
    params = init_params(k_param, layer_sizes=(2, 16, 16, 1))

    # Small shape consistent with the module: a batch of 8 two-feature samples.
    x_small = jax.random.normal(k_small, (8, 2), dtype=jnp.float32)
    out_small = jax.block_until_ready(mlp_forward(x_small, params, min_kernel_batch=0))
    ref_small = mlp_reference(x_small, params)
    assert out_small.shape == (8, 1), out_small.shape
    assert jnp.allclose(out_small, ref_small, atol=1e-4, rtol=1e-4), "small-batch mismatch"

    # Larger, non-multiple-of-tile batch exercising the tiled/pipelined grid.
    x_big = jax.random.normal(k_big, (2061, 2), dtype=jnp.float32)
    out_big = jax.block_until_ready(mlp_forward(x_big, params, tile_b=512))
    ref_big = mlp_reference(x_big, params)
    assert out_big.shape == (2061, 1), out_big.shape
    assert jnp.allclose(out_big, ref_big, atol=1e-4, rtol=1e-4), "large-batch mismatch"

    print("KERNEL_OK")
</pallas_src>

<mosaic_0001>
module attributes {stable_mosaic.version = 11 : i64} {
  func.func @mlp_kernel(%arg0: i32, %arg1: memref<2x128xf32, #tpu.memory_space<vmem>>, %arg2: memref<16x2xf32, #tpu.memory_space<vmem>>, %arg3: memref<16x1xf32, #tpu.memory_space<vmem>>, %arg4: memref<16x16xf32, #tpu.memory_space<vmem>>, %arg5: memref<16x1xf32, #tpu.memory_space<vmem>>, %arg6: memref<16x1xf32, #tpu.memory_space<vmem>>, %arg7: memref<1x1xf32, #tpu.memory_space<vmem>>, %arg8: memref<1x128xf32, #tpu.memory_space<vmem>>) attributes {dimension_semantics = [#tpu.dimension_semantics<parallel>], iteration_bounds = array<i64: 1>, scalar_prefetch = 0 : i64, scratch_operands = 0 : i64, tpu.core_type = #tpu.core_type<tc>, window_params = [{transform_indices = @transform_0, window_bounds = array<i64: 2, 128>}, {pipeline_mode = #tpu.pipeline_mode<synchronous>, transform_indices = @transform_1, window_bounds = array<i64: 16, 2>}, {pipeline_mode = #tpu.pipeline_mode<synchronous>, transform_indices = @transform_2, window_bounds = array<i64: 16, 1>}, {pipeline_mode = #tpu.pipeline_mode<synchronous>, transform_indices = @transform_3, window_bounds = array<i64: 16, 16>}, {pipeline_mode = #tpu.pipeline_mode<synchronous>, transform_indices = @transform_4, window_bounds = array<i64: 16, 1>}, {pipeline_mode = #tpu.pipeline_mode<synchronous>, transform_indices = @transform_5, window_bounds = array<i64: 16, 1>}, {pipeline_mode = #tpu.pipeline_mode<synchronous>, transform_indices = @transform_6, window_bounds = array<i64: 1, 1>}, {transform_indices = @transform_7, window_bounds = array<i64: 1, 128>}]} {
    %c0 = arith.constant 0 : index
    %c0_0 = arith.constant 0 : index
    %0 = vector.load %arg1[%c0, %c0_0] : memref<2x128xf32, #tpu.memory_space<vmem>>, vector<2x128xf32>
    %1 = vector.extract_strided_slice %0 {offsets = [0, 0], sizes = [1, 128], strides = [1, 1]} : vector<2x128xf32> to vector<1x128xf32>
    %2 = vector.extract_strided_slice %0 {offsets = [1, 0], sizes = [1, 128], strides = [1, 1]} : vector<2x128xf32> to vector<1x128xf32>
    %c0_1 = arith.constant 0 : index
    %c0_2 = arith.constant 0 : index
    %3 = vector.load %arg2[%c0_1, %c0_2] : memref<16x2xf32, #tpu.memory_space<vmem>>, vector<16x2xf32>
    %4 = vector.extract_strided_slice %3 {offsets = [0, 0], sizes = [16, 1], strides = [1, 1]} : vector<16x2xf32> to vector<16x1xf32>
    %5 = vector.broadcast %4 : vector<16x1xf32> to vector<16x128xf32>
    %6 = vector.broadcast %1 : vector<1x128xf32> to vector<16x128xf32>
    %7 = arith.mulf %5, %6 : vector<16x128xf32>
    %8 = vector.extract_strided_slice %3 {offsets = [0, 1], sizes = [16, 1], strides = [1, 1]} : vector<16x2xf32> to vector<16x1xf32>
    %9 = vector.broadcast %8 : vector<16x1xf32> to vector<16x128xf32>
    %10 = vector.broadcast %2 : vector<1x128xf32> to vector<16x128xf32>
    %11 = arith.mulf %9, %10 : vector<16x128xf32>
    %12 = arith.addf %7, %11 : vector<16x128xf32>
    %c0_3 = arith.constant 0 : index
    %c0_4 = arith.constant 0 : index
    %13 = vector.load %arg3[%c0_3, %c0_4] : memref<16x1xf32, #tpu.memory_space<vmem>>, vector<16x1xf32>
    %14 = vector.broadcast %13 : vector<16x1xf32> to vector<16x128xf32>
    %15 = arith.addf %12, %14 : vector<16x128xf32>
    %cst = arith.constant 0.000000e+00 : f32
    %16 = vector.broadcast %cst : f32 to vector<16x128xf32>
    %17 = arith.maximumf %15, %16 : vector<16x128xf32>
    %c0_5 = arith.constant 0 : index
    %c0_6 = arith.constant 0 : index
    %18 = vector.load %arg4[%c0_5, %c0_6] : memref<16x16xf32, #tpu.memory_space<vmem>>, vector<16x16xf32>
    %cst_7 = arith.constant dense<0.000000e+00> : vector<16x128xf32>
    %19 = tpu.matmul %18, %17, %cst_7 {dimension_numbers = #tpu.dot_dimension_numbers<[1], [0], [0], [1], [0, 0, 1, 1], [], []>} : vector<16x16xf32>, vector<16x128xf32>, vector<16x128xf32> -> vector<16x128xf32>
    %c0_8 = arith.constant 0 : index
    %c0_9 = arith.constant 0 : index
    %20 = vector.load %arg5[%c0_8, %c0_9] : memref<16x1xf32, #tpu.memory_space<vmem>>, vector<16x1xf32>
    %21 = vector.broadcast %20 : vector<16x1xf32> to vector<16x128xf32>
    %22 = arith.addf %19, %21 : vector<16x128xf32>
    %cst_10 = arith.constant 0.000000e+00 : f32
    %23 = vector.broadcast %cst_10 : f32 to vector<16x128xf32>
    %24 = arith.maximumf %22, %23 : vector<16x128xf32>
    %c0_11 = arith.constant 0 : index
    %c0_12 = arith.constant 0 : index
    %25 = vector.load %arg6[%c0_11, %c0_12] : memref<16x1xf32, #tpu.memory_space<vmem>>, vector<16x1xf32>
    %26 = vector.broadcast %25 : vector<16x1xf32> to vector<16x128xf32>
    %27 = arith.mulf %26, %24 : vector<16x128xf32>
    %cst_13 = arith.constant dense<0.000000e+00> : vector<128xf32>
    %28 = vector.multi_reduction <add>, %27, %cst_13 [0] : vector<16x128xf32> to vector<128xf32>
    %29 = vector.shape_cast %28 : vector<128xf32> to vector<1x128xf32>
    %c0_14 = arith.constant 0 : index
    %c0_15 = arith.constant 0 : index
    %30 = vector.load %arg7[%c0_14, %c0_15] : memref<1x1xf32, #tpu.memory_space<vmem>>, vector<1x1xf32>
    %31 = vector.broadcast %30 : vector<1x1xf32> to vector<1x128xf32>
    %32 = arith.addf %29, %31 : vector<1x128xf32>
    %c0_16 = arith.constant 0 : index
    %c0_17 = arith.constant 0 : index
    %33 = vector.load %arg8[%c0_16, %c0_17] : memref<1x128xf32, #tpu.memory_space<vmem>>, vector<1x128xf32>
    tpu.vector_store %arg8[%c0_16, %c0_17], %32 {strides = array<i32>} : memref<1x128xf32, #tpu.memory_space<vmem>>, vector<1x128xf32>,
    return
  }
  func.func @transform_0(%arg0: i32) -> (i32, i32) {
    %c0_i32 = arith.constant 0 : i32
    %c0_i32_0 = arith.constant 0 : i32
    return %c0_i32, %arg0 : i32, i32
  }
  func.func @transform_1(%arg0: i32) -> (i32, i32) {
    %c0_i32 = arith.constant 0 : i32
    %c0_i32_0 = arith.constant 0 : i32
    %c0_i32_1 = arith.constant 0 : i32
    return %c0_i32, %c0_i32_0 : i32, i32
  }
  func.func @transform_2(%arg0: i32) -> (i32, i32) {
    %c0_i32 = arith.constant 0 : i32
    %c0_i32_0 = arith.constant 0 : i32
    %c0_i32_1 = arith.constant 0 : i32
    return %c0_i32, %c0_i32_0 : i32, i32
  }
  func.func @transform_3(%arg0: i32) -> (i32, i32) {
    %c0_i32 = arith.constant 0 : i32
    %c0_i32_0 = arith.constant 0 : i32
    %c0_i32_1 = arith.constant 0 : i32
    return %c0_i32, %c0_i32_0 : i32, i32
  }
  func.func @transform_4(%arg0: i32) -> (i32, i32) {
    %c0_i32 = arith.constant 0 : i32
    %c0_i32_0 = arith.constant 0 : i32
    %c0_i32_1 = arith.constant 0 : i32
    return %c0_i32, %c0_i32_0 : i32, i32
  }
  func.func @transform_5(%arg0: i32) -> (i32, i32) {
    %c0_i32 = arith.constant 0 : i32
    %c0_i32_0 = arith.constant 0 : i32
    %c0_i32_1 = arith.constant 0 : i32
    return %c0_i32, %c0_i32_0 : i32, i32
  }
  func.func @transform_6(%arg0: i32) -> (i32, i32) {
    %c0_i32 = arith.constant 0 : i32
    %c0_i32_0 = arith.constant 0 : i32
    %c0_i32_1 = arith.constant 0 : i32
    return %c0_i32, %c0_i32_0 : i32, i32
  }
  func.func @transform_7(%arg0: i32) -> (i32, i32) {
    %c0_i32 = arith.constant 0 : i32
    %c0_i32_0 = arith.constant 0 : i32
    return %c0_i32, %arg0 : i32, i32
  }
}

</mosaic_0001>

<llo_original>
// kernel: tpu_custom_call.1
$region0: #{tpu_custom_call.1}
  #allocation0 [shape = 'u32[]', space=smem, size = 0x4, offset = 0x4, fixed_abs, tag = 'smem constant byte address 0x4 - core index']
  #allocation1 [shape = 'u32[144,128]{1,0:T(1,128)}', space=vmem, size = 0x12000, scoped, tag = 'internal scratch']
  #allocation2 [shape = 'f32[1,1]{1,0:T(1,128)S(1)}', space=vmem, size = 0x200, scoped, tag = 'scoped memory for tpu_custom_call.1']
  %s0 = inlined_call_operand.vmem [shape: f32[2,128], index: 0, kind: input, shape index: {}]
  %s1 = inlined_call_operand.vmem [shape: f32[16,2], index: 1, kind: input, shape index: {}]
  %s2 = inlined_call_operand.vmem [shape: f32[16,1], index: 2, kind: input, shape index: {}]
  %s3 = inlined_call_operand.vmem [shape: f32[16,16], index: 3, kind: input, shape index: {}]
  %s4 = inlined_call_operand.vmem [shape: f32[16,1], index: 4, kind: input, shape index: {}]
  %s5 = inlined_call_operand.vmem [shape: f32[16,1], index: 5, kind: input, shape index: {}]
  %s6 = inlined_call_operand.<no memory space> [shape: f32[1,1], index: 6, kind: input, shape index: {}]
  %s7 = inlined_call_operand.hbm [shape: f32[1,128], index: 7, kind: output, shape index: {}]
  %s8 = sld [smem:[#allocation0]]
  $region38: #{tpu_custom_call.1} parent=0
    _
  %s10 = ssub.s32 1, %s8
  %s11 = scalar_select 0, %s10, %s8
  %v12 = vstv %s6
  %13 = vst [vmem:[#allocation2] sm:$0x1] %v12
  $region1: #{tpu_custom_call.1} parent=0
    #allocation3 [shape = 'u8[512]{0}', space=vmem, size = 0x400, scoped, tag = 'output window, operand 0, single buffered']
    #allocation4 [shape = 's32[1]{0}', space=sflag, size = 0x4, scoped, tag = 'scoped memory for tpu_custom_call.1']
    %14 = vsyncpa [#allocation4], 0
    // Predicated region
    $region2: #{tpu_custom_call.1} parent=1 // pred_check
      _
    $region3: #{tpu_custom_call.1} parent=1 // pred_check_branch
      %16 = sbr.rel (0) target = $region5
    $region4: #{tpu_custom_call.1} parent=1 // pred_region
      _
    $region5: #{tpu_custom_call.1} parent=1 // pred_fallthru
      _
    // Predicated region
    $region6: #{tpu_custom_call.1} parent=1 // pred_check
      _
    $region7: #{tpu_custom_call.1} parent=1 // pred_check_branch
      %18 = sbr.rel (0) target = $region9
    $region8: #{tpu_custom_call.1} parent=1 // pred_region
      _
    $region9: #{tpu_custom_call.1} parent=1 // pred_fallthru
      _
    // Predicated region
    $region10: #{tpu_custom_call.1} parent=1 // pred_check
      _
    $region11: #{tpu_custom_call.1} parent=1 // pred_check_branch
      %20 = sbr.rel (0) target = $region13
    $region12: #{tpu_custom_call.1} parent=1 // pred_region
      _
    $region13: #{tpu_custom_call.1} parent=1 // pred_fallthru
      _
    // Predicated region
    $region14: #{tpu_custom_call.1} parent=1 // pred_check
      _
    $region15: #{tpu_custom_call.1} parent=1 // pred_check_branch
      %22 = sbr.rel (0) target = $region17
    $region16: #{tpu_custom_call.1} parent=1 // pred_region
      _
    $region17: #{tpu_custom_call.1} parent=1 // pred_fallthru
      _
    // Predicated region
    $region18: #{tpu_custom_call.1} parent=1 // pred_check
      _
    $region19: #{tpu_custom_call.1} parent=1 // pred_check_branch
      %24 = sbr.rel (0) target = $region21
    $region20: #{tpu_custom_call.1} parent=1 // pred_region
      _
    $region21: #{tpu_custom_call.1} parent=1 // pred_fallthru
      _
    // Predicated region
    $region22: #{tpu_custom_call.1} parent=1 // pred_check
      _
    $region23: #{tpu_custom_call.1} parent=1 // pred_check_branch
      %26 = sbr.rel (0) target = $region25
    $region24: #{tpu_custom_call.1} parent=1 // pred_region
      _
    $region25: #{tpu_custom_call.1} parent=1 // pred_fallthru
      _
    // Predicated region
    $region26: #{tpu_custom_call.1} parent=1 // pred_check
      _
    $region27: #{tpu_custom_call.1} parent=1 // pred_check_branch
      %28 = sbr.rel (0) target = $region29
    $region28: #{tpu_custom_call.1} parent=1 // pred_region
      _
    $region29: #{tpu_custom_call.1} parent=1 // pred_fallthru
      _
    %v29 = vld [vmem:[%s0] sm:$0x3]
    %v30 = vld [vmem:[%s1] sm:$0xff]
    %v31 = vld [vmem:[%s1 + $0x8] sm:$0xff]
    %33 = vset.pattern.permute.xlu0 0
    %34 = vperm.xlu0 %33, %v30
    %v35 = vpop.permute.xlu0 %34
    %38 = vset.pattern.permute.xlu0 0
    %39 = vperm.xlu0 %38, %v31
    %v40 = vpop.permute.xlu0 %39
    %v42 = vlaneseq
    %v43 = vshrl.u32 %v42, 7
    %v44 = vsub.s32 0, %v43
    %v45 = vrot.slane %v29, %v44
    %v46 = vmul.f32 %v35, %v45
    %v47 = vmul.f32 %v40, %v45
    %48 = vset.pattern.permute.xlu0 1
    %49 = vperm.xlu0 %48, %v30
    %v50 = vpop.permute.xlu0 %49
    %52 = vset.pattern.permute.xlu0 1
    %53 = vperm.xlu0 %52, %v31
    %v54 = vpop.permute.xlu0 %53
    %v56 = vlaneseq
    %v57 = vshrl.u32 %v56, 7
    %v58 = vsub.s32 1, %v57
    %v59 = vrot.slane %v29, %v58
    %v60 = vmul.f32 %v50, %v59
    %v61 = vmul.f32 %v54, %v59
    %v62 = vadd.f32 %v46, %v60
    %v63 = vadd.f32 %v47, %v61
    %v64 = vld [vmem:[%s2] sm:$0xff]
    %v65 = vld [vmem:[%s2 + $0x8] sm:$0xff]
    %67 = vset.pattern.permute.xlu0 0
    %68 = vperm.xlu0 %67, %v64
    %v69 = vpop.permute.xlu0 %68
    %72 = vset.pattern.permute.xlu0 0
    %73 = vperm.xlu0 %72, %v65
    %v74 = vpop.permute.xlu0 %73
    %v76 = vadd.f32 %v62, %v69
    %v77 = vadd.f32 %v63, %v74
    %v78 = vmax.f32 %v76, 0.0
    %v79 = vmax.f32 %v77, 0.0
    %v80 = vld [vmem:[%s3] sm:$0xff]
    %v81 = vld [vmem:[%s3 + $0x8] sm:$0xff]
    %v82 = vld [vmem:[%s4] sm:$0xff]
    %v83 = vld [vmem:[%s4 + $0x8] sm:$0xff]
    %85 = vset.pattern.permute.xlu0 0
    %86 = vperm.xlu0 %85, %v82
    %v87 = vpop.permute.xlu0 %86
    %90 = vset.pattern.permute.xlu0 0
    %91 = vperm.xlu0 %90, %v83
    %v92 = vpop.permute.xlu0 %91
    %vm94 = vcmask 130048
    %v96 = vsel %vm94, %v80, 0
    %v99 = vsel %vm94, %v81, 0
    %101 = vmatprep.subr.mxu0 0.0
    %102 = vmatpush1.msra.mxu0 %v78
    %103 = vmatprep.subr.mxu0 0.0
    %104 = vmatpush1.msra.mxu0 %v79
    %105 = vmatprep.subr.mxu0 0.0
    %106 = vmatpush1.msra.mxu0 0.0
    %107 = vmatprep.subr.mxu0 0.0
    %108 = vmatpush1.msra.mxu0 0.0
    %109 = vmatprep.subr.mxu0 0.0
    %110 = vmatpush1.msra.mxu0 0.0
    %111 = vmatprep.subr.mxu0 0.0
    %112 = vmatpush1.msra.mxu0 0.0
    %113 = vmatprep.subr.mxu0 0.0
    %114 = vmatpush1.msra.mxu0 0.0
    %115 = vmatprep.subr.mxu0 0.0
    %116 = vmatpush1.msra.mxu0 0.0
    %117 = vmatprep.subr.mxu0 0.0
    %118 = vmatpush1.msra.mxu0 0.0
    %119 = vmatprep.subr.mxu0 0.0
    %120 = vmatpush1.msra.mxu0 0.0
    %121 = vmatprep.subr.mxu0 0.0
    %122 = vmatpush1.msra.mxu0 0.0
    %123 = vmatprep.subr.mxu0 0.0
    %124 = vmatpush1.msra.mxu0 0.0
    %125 = vmatprep.subr.mxu0 0.0
    %126 = vmatpush1.msra.mxu0 0.0
    %127 = vmatprep.subr.mxu0 0.0
    %128 = vmatpush1.msra.mxu0 0.0
    %129 = vmatprep.subr.mxu0 0.0
    %130 = vmatpush1.msra.mxu0 0.0
    %131 = vmatprep.subr.mxu0 0.0
    %132 = vmatpush1.msra.mxu0 0.0
    %133 = vmatprep.subr.mxu0 0.0
    %134 = vmatpush1.msra.mxu0 0.0
    %135 = vmatprep.subr.mxu0 0.0
    %136 = vmatpush1.msra.mxu0 0.0
    %137 = vmatprep.subr.mxu0 0.0
    %138 = vmatpush1.msra.mxu0 0.0
    %139 = vmatprep.subr.mxu0 0.0
    %140 = vmatpush1.msra.mxu0 0.0
    %141 = vmatprep.subr.mxu0 0.0
    %142 = vmatpush1.msra.mxu0 0.0
    %143 = vmatprep.subr.mxu0 0.0
    %144 = vmatpush1.msra.mxu0 0.0
    %145 = vmatprep.subr.mxu0 0.0
    %146 = vmatpush1.msra.mxu0 0.0
    %147 = vmatprep.subr.mxu0 0.0
    %148 = vmatpush1.msra.mxu0 0.0
    %149 = vmatprep.subr.mxu0 0.0
    %150 = vmatpush1.msra.mxu0 0.0
    %151 = vmatprep.subr.mxu0 0.0
    %152 = vmatpush1.msra.mxu0 0.0
    %153 = vmatprep.subr.mxu0 0.0
    %154 = vmatpush1.msra.mxu0 0.0
    %155 = vmatprep.subr.mxu0 0.0
    %156 = vmatpush1.msra.mxu0 0.0
    %157 = vmatprep.subr.mxu0 0.0
    %158 = vmatpush1.msra.mxu0 0.0
    %159 = vmatprep.subr.mxu0 0.0
    %160 = vmatpush1.msra.mxu0 0.0
    %161 = vmatprep.subr.mxu0 0.0
    %162 = vmatpush1.msra.mxu0 0.0
    %163 = vmatprep.subr.mxu0 0.0
    %164 = vmatpush1.msra.mxu0 0.0
    %165 = vmatprep.mubr.f32.mxu0 0.0
    %166 = vmatmul.mubr.f32.gmra.mrb[0].mxu0 %v96
    %v167 = vpop.f32.mrb[0].mxu0
    %v168 = vadd.f32 %v87, %v167
    %v169 = vpop.f32.mrb[0].mxu0
    %170 = vmatprep.mubr.f32.mxu0 0.0
    %171 = vmatmul.mubr.f32.gmra.mrb[0].mxu0 %v99
    %v172 = vpop.f32.mrb[0].mxu0
    %v173 = vadd.f32 %v92, %v172
    %v174 = vpop.f32.mrb[0].mxu0
    %175 = vdwg.mxu0
    %v176 = vmax.f32 %v168, 0.0
    %v177 = vmax.f32 %v173, 0.0
    %v178 = vld [vmem:[%s5] sm:$0xff]
    %v179 = vld [vmem:[%s5 + $0x8] sm:$0xff]
    %181 = vset.pattern.permute.xlu0 0
    %182 = vperm.xlu0 %181, %v178
    %v183 = vpop.permute.xlu0 %182
    %186 = vset.pattern.permute.xlu0 0
    %187 = vperm.xlu0 %186, %v179
    %v188 = vpop.permute.xlu0 %187
    %v190 = vmul.f32 %v183, %v176
    %v191 = vmul.f32 %v188, %v177
    %v192 = vadd.f32 %v190, %v191
    %v193 = vrot.slane %v192, 4
    %v194 = vadd.f32 %v192, %v193
    %v195 = vrot.slane %v194, 2
    %v196 = vadd.f32 %v194, %v195
    %v197 = vrot.slane %v196, 1
    %v198 = vadd.f32 %v196, %v197
    %v199 = vld [vmem:[#allocation2] sm:$0x1]
    %201 = vset.pattern.permute.xlu0 0
    %202 = vperm.xlu0 %201, %v199
    %v203 = vpop.permute.xlu0 %202
    %v205 = vlaneseq
    %v206 = vshrl.u32 %v205, 7
    %v207 = vsub.s32 0, %v206
    %v208 = vrot.slane %v203, %v207
    %v209 = vadd.f32 %v198, %v208
    %210 = vst [vmem:[#allocation3] sm:$0x1] %v209
    // Predicated region
    $region30: #{tpu_custom_call.1} parent=1 // pred_check
      _
    $region31: #{tpu_custom_call.1} parent=1 // pred_check_branch
      %212 = sbr.rel (0) target = $region33
    $region32: #{tpu_custom_call.1} parent=1 // pred_region
      %s214 = ssub.s32 16, 16
      %215 = vsyncadd [#allocation4], %s214
      %s217 = sshll.u32 [#allocation3], 4
      %s218 = int_to_ptr.vmem [resolvable:$true] %s217
      %220 = dma.vmem_to_hbm [thread:$0]  %s218, 16, %s7, [#allocation4]
    $region33: #{tpu_custom_call.1} parent=1 // pred_fallthru
      _
    // Predicated region
    $region34: #{tpu_custom_call.1} parent=1 // pred_check
      _
    $region35: #{tpu_custom_call.1} parent=1 // pred_check_branch
      %222 = sbr.rel (0) target = $region37
    $region36: #{tpu_custom_call.1} parent=1 // pred_region
      %223 = dma.done [#allocation4], 16
    $region37: #{tpu_custom_call.1} parent=1 // pred_fallthru
      _
    %224 = vsyncpa [#allocation4], 1

</llo_original>
